<compile_context>
chip_gen: v7x
topology: tpu7x:2x2x1
jax: 0.10.0
libtpu: 0.0.40
codegen_flags: <defaults>
</compile_context>

<pallas_src>
import functools

import jax
import jax.numpy as jnp
from jax.experimental import pallas as pl
from jax.experimental.pallas import tpu as pltpu


def _vmem_limit_bytes():
    """Generation-aware scoped-VMEM budget (~75% of physical capacity, with a safe fallback)."""
    try:
        cap = pltpu.get_tpu_info().vmem_capacity_bytes
    except Exception:
        cap = 128 * 1024 * 1024
    return max(32 * 1024 * 1024, min(int(cap * 3 // 4), 100 * 1024 * 1024))


def _layer_norm(x, gamma, beta, eps=1e-5):
    mu = jnp.mean(x, axis=-1, keepdims=True)
    var = jnp.mean((x - mu) ** 2, axis=-1, keepdims=True)
    return (x - mu) * jax.lax.rsqrt(var + eps) * gamma + beta


# --------------------------------------------------------------------------------------------
# Kernel 1: flash-style multi-head attention over precomputed per-head Q/K/V.
# --------------------------------------------------------------------------------------------
def _flash_attn_kernel(q_ref, k_ref, v_ref, o_ref, m_sc, l_sc, acc_sc):
    ki = pl.program_id(2)
    nk = pl.num_programs(2)

    @pl.when(ki == 0)
    def _init():
        m_sc[...] = jnp.full_like(m_sc, -jnp.inf)
        l_sc[...] = jnp.zeros_like(l_sc)
        acc_sc[...] = jnp.zeros_like(acc_sc)

    q = q_ref[0]                                   # (H, TQ, dh) bf16, pre-scaled by 1/sqrt(dh)
    k = k_ref[0]                                   # (H, TK, dh) bf16
    v = v_ref[0]                                   # (H, TK, dh) bf16

    # Head-batched score matmul on the MXU, f32 accumulation.
    s = jnp.einsum("hqd,hkd->hqk", q, k, preferred_element_type=jnp.float32)   # (H, TQ, TK)

    m_prev = m_sc[...]
    m_new = jnp.maximum(m_prev, jnp.max(s, axis=-1, keepdims=True))
    alpha = jnp.exp(m_prev - m_new)
    p = jnp.exp(s - m_new)
    l_sc[...] = alpha * l_sc[...] + jnp.sum(p, axis=-1, keepdims=True)
    acc_sc[...] = alpha * acc_sc[...] + jnp.einsum(
        "hqk,hkd->hqd", p.astype(jnp.bfloat16), v, preferred_element_type=jnp.float32)
    m_sc[...] = m_new

    @pl.when(ki == nk - 1)
    def _finalize():
        inv_l = pl.reciprocal(l_sc[...], approx=True)
        o_ref[0] = (acc_sc[...] * inv_l).astype(o_ref.dtype)


# --------------------------------------------------------------------------------------------
# Kernel 2: dense epilogue — output projection + residual/norm1 + FFN + residual/norm2.
# --------------------------------------------------------------------------------------------
def _epilogue_kernel(x_ref, a_ref,
                     wo_ref, bo_ref, w1_ref, b1_ref, w2_ref, b2_ref,
                     g1_ref, be1_ref, g2_ref, be2_ref,
                     o_ref):
    # Dense output projection: contraction depth D = H*dh (review item: no per-head dh matmuls).
    new_x = jnp.dot(a_ref[0], wo_ref[...], preferred_element_type=jnp.float32) + bo_ref[...]

    x_res = x_ref[0]                                              # (TQ, D) f32 residual
    x1 = _layer_norm(x_res + new_x, g1_ref[...], be1_ref[...])    # residual + norm1

    # Position-wise FFN: conv1(1x1) -> relu -> conv2(1x1); bf16 operands, f32 accumulation.
    y = jnp.dot(x1.astype(jnp.bfloat16), w1_ref[...],
                preferred_element_type=jnp.float32) + b1_ref[...]
    y = jnp.maximum(y, 0.0)
    y = jnp.dot(y.astype(jnp.bfloat16), w2_ref[...],
                preferred_element_type=jnp.float32) + b2_ref[...]

    o_ref[0] = _layer_norm(x1 + y, g2_ref[...], be2_ref[...]).astype(o_ref.dtype)


# --------------------------------------------------------------------------------------------
# Wrapper
# --------------------------------------------------------------------------------------------
def encoder_layer(x, params, *, n_heads, tile_q=None, tile_k=None):
    """x: (B, L, D) float32. params: dict of f32 weights in (in, out) layout."""
    B, L, D = x.shape
    H = n_heads
    assert D % H == 0, "d_model must be divisible by n_heads"
    dh = D // H
    bf16, f32 = jnp.bfloat16, jnp.float32

    auto_tiles = tile_q is None
    TQ = min(tile_q if tile_q is not None else 256, L)
    TK = min(tile_k if tile_k is not None else 256, L)
    if auto_tiles:
        # Make sure the two parallel grid axes expose >= 2 points (v7x has 2 TensorCores).
        while (B * (L // TQ) < 2 and TQ % 2 == 0 and (TQ // 2) % 8 == 0
               and L % (TQ // 2) == 0):
            TQ //= 2
    assert L % TQ == 0 and L % TK == 0, "seq_len must be divisible by the chosen tiles"
    nq, nk = L // TQ, L // TK

    vmem_limit = _vmem_limit_bytes()
    scale = 1.0 / (dh ** 0.5)

    # ---- Q/K/V projections hoisted out of the flash loop (dense XLA matmuls, done once) -------
    x_bf = x.astype(bf16)

    def _project_heads(w, b, s=None):
        y = jnp.dot(x_bf, w.astype(bf16), preferred_element_type=f32) + b.astype(f32)
        if s is not None:
            y = y * s
        return y.reshape(B, L, H, dh).transpose(0, 2, 1, 3).astype(bf16)     # (B, H, L, dh)

    q = _project_heads(params["wq"], params["bq"], scale)   # 1/sqrt(dh) folded into Q once
    k = _project_heads(params["wk"], params["bk"])
    v = _project_heads(params["wv"], params["bv"])

    # ---- flash attention kernel ---------------------------------------------------------------
    attn = pl.pallas_call(
        _flash_attn_kernel,
        grid=(B, nq, nk),
        in_specs=[
            pl.BlockSpec((1, H, TQ, dh), lambda b, qi, ki: (b, 0, qi, 0)),
            pl.BlockSpec((1, H, TK, dh), lambda b, qi, ki: (b, 0, ki, 0)),
            pl.BlockSpec((1, H, TK, dh), lambda b, qi, ki: (b, 0, ki, 0)),
        ],
        out_specs=pl.BlockSpec((1, H, TQ, dh), lambda b, qi, ki: (b, 0, qi, 0)),
        out_shape=jax.ShapeDtypeStruct((B, H, L, dh), bf16),
        scratch_shapes=[
            pltpu.VMEM((H, TQ, 1), f32),     # running max
            pltpu.VMEM((H, TQ, 1), f32),     # running softmax denominator
            pltpu.VMEM((H, TQ, dh), f32),    # attention output accumulator
        ],
        compiler_params=pltpu.CompilerParams(
            dimension_semantics=("parallel", "parallel", "arbitrary"),
            vmem_limit_bytes=vmem_limit,
        ),
    )(q, k, v)

    # Head merge (B, H, L, dh) -> (B, L, D) done by XLA; cheap, memory-bound bf16 transpose.
    attn = attn.transpose(0, 2, 1, 3).reshape(B, L, D)

    # ---- dense epilogue kernel ----------------------------------------------------------------
    weights = [
        params["wo"].astype(bf16), params["bo"].astype(f32),
        params["w1"].astype(bf16), params["b1"].astype(f32),
        params["w2"].astype(bf16), params["b2"].astype(f32),
        params["g1"].astype(f32), params["be1"].astype(f32),
        params["g2"].astype(f32), params["be2"].astype(f32),
    ]

    def _const2d(w):
        # TODO(synk): on v7x (64 MiB VMEM) consider pipeline_mode=pl.Buffered(1) here to
        #             single-buffer these grid-invariant weights.
        return pl.BlockSpec(w.shape, lambda b, i: (0, 0))

    out = pl.pallas_call(
        _epilogue_kernel,
        grid=(B, nq),
        in_specs=[
            pl.BlockSpec((1, TQ, D), lambda b, i: (b, i, 0)),    # x tile (f32, residual path)
            pl.BlockSpec((1, TQ, D), lambda b, i: (b, i, 0)),    # merged attention output (bf16)
        ] + [_const2d(w) for w in weights],
        out_specs=pl.BlockSpec((1, TQ, D), lambda b, i: (b, i, 0)),
        out_shape=jax.ShapeDtypeStruct((B, L, D), x.dtype),
        compiler_params=pltpu.CompilerParams(
            dimension_semantics=("parallel", "parallel"),
            vmem_limit_bytes=vmem_limit,
        ),
    )(x, attn, *weights)

    return out


# --------------------------------------------------------------------------------------------
# Pure-JAX f32 reference mirroring the PyTorch forward (eval mode).
# --------------------------------------------------------------------------------------------
def encoder_layer_ref(x, params, *, n_heads):
    B, L, D = x.shape
    dh = D // n_heads
    q = x @ params["wq"] + params["bq"]
    k = x @ params["wk"] + params["bk"]
    v = x @ params["wv"] + params["bv"]
    q = q.reshape(B, L, n_heads, dh).transpose(0, 2, 1, 3)
    k = k.reshape(B, L, n_heads, dh).transpose(0, 2, 1, 3)
    v = v.reshape(B, L, n_heads, dh).transpose(0, 2, 1, 3)
    s = jnp.einsum("bhqd,bhkd->bhqk", q, k) / jnp.sqrt(jnp.float32(dh))
    p = jax.nn.softmax(s, axis=-1)
    attn = jnp.einsum("bhqk,bhkd->bhqd", p, v).transpose(0, 2, 1, 3).reshape(B, L, D)
    new_x = attn @ params["wo"] + params["bo"]

    def ln(z, g, b, eps=1e-5):
        mu = jnp.mean(z, axis=-1, keepdims=True)
        var = jnp.mean((z - mu) ** 2, axis=-1, keepdims=True)
        return (z - mu) / jnp.sqrt(var + eps) * g + b

    x1 = ln(x + new_x, params["g1"], params["be1"])
    y = jnp.maximum(x1 @ params["w1"] + params["b1"], 0.0)
    y = y @ params["w2"] + params["b2"]
    return ln(x1 + y, params["g2"], params["be2"])


def make_params(key, d_model, d_ff):
    keys = jax.random.split(key, 12)
    sc_d = 1.0 / jnp.sqrt(jnp.float32(d_model))
    sc_f = 1.0 / jnp.sqrt(jnp.float32(d_ff))
    return {
        # attention projections, stored as (in, out)
        "wq": jax.random.normal(keys[0], (d_model, d_model), jnp.float32) * sc_d,
        "wk": jax.random.normal(keys[1], (d_model, d_model), jnp.float32) * sc_d,
        "wv": jax.random.normal(keys[2], (d_model, d_model), jnp.float32) * sc_d,
        "wo": jax.random.normal(keys[3], (d_model, d_model), jnp.float32) * sc_d,
        "bq": jax.random.normal(keys[4], (1, d_model), jnp.float32) * 0.02,
        "bk": jax.random.normal(keys[5], (1, d_model), jnp.float32) * 0.02,
        "bv": jax.random.normal(keys[6], (1, d_model), jnp.float32) * 0.02,
        "bo": jax.random.normal(keys[7], (1, d_model), jnp.float32) * 0.02,
        # conv1 / conv2 (1x1 convs == per-position linears), stored as (in, out)
        "w1": jax.random.normal(keys[8], (d_model, d_ff), jnp.float32) * sc_d,
        "b1": jax.random.normal(keys[9], (1, d_ff), jnp.float32) * 0.02,
        "w2": jax.random.normal(keys[10], (d_ff, d_model), jnp.float32) * sc_f,
        "b2": jax.random.normal(keys[11], (1, d_model), jnp.float32) * 0.02,
        # layer norms
        "g1": jnp.ones((1, d_model), jnp.float32),
        "be1": jnp.zeros((1, d_model), jnp.float32),
        "g2": jnp.ones((1, d_model), jnp.float32),
        "be2": jnp.zeros((1, d_model), jnp.float32),
    }


if __name__ == "__main__":
    # Small deterministic config; tiles of 8 give (B, nq, nk) = (2, 2, 2) so the flash-style
    # KV accumulation and multi-Q-tile paths are actually exercised.
    B, L, d_model, d_ff, n_heads = 2, 16, 32, 128, 4

    key = jax.random.PRNGKey(0)
    kx, kp = jax.random.split(key)
    x = jax.random.normal(kx, (B, L, d_model), jnp.float32)
    params = make_params(kp, d_model, d_ff)

    out = encoder_layer(x, params, n_heads=n_heads, tile_q=8, tile_k=8)
    out = jax.block_until_ready(out)

    ref = encoder_layer_ref(x, params, n_heads=n_heads)
    assert out.shape == (B, L, d_model)
    # Loose tolerance: matmuls run with bf16 operands (f32 accumulate); reference is pure f32.
    assert jnp.allclose(out, ref, atol=1e-1, rtol=1e-1), (
        f"max abs err = {jnp.max(jnp.abs(out - ref))}")

    print("KERNEL_OK")
</pallas_src>

<mosaic_0001>
module attributes {stable_mosaic.version = 11 : i64} {
  func.func @_flash_attn_kernel(%arg0: i32, %arg1: i32, %arg2: i32, %arg3: memref<1x4x8x8xbf16, #tpu.memory_space<vmem>>, %arg4: memref<1x4x8x8xbf16, #tpu.memory_space<vmem>>, %arg5: memref<1x4x8x8xbf16, #tpu.memory_space<vmem>>, %arg6: memref<1x4x8x8xbf16, #tpu.memory_space<vmem>>, %arg7: memref<4x8x1xf32, #tpu.memory_space<vmem>>, %arg8: memref<4x8x1xf32, #tpu.memory_space<vmem>>, %arg9: memref<4x8x8xf32, #tpu.memory_space<vmem>>) attributes {dimension_semantics = [#tpu.dimension_semantics<parallel>, #tpu.dimension_semantics<parallel>, #tpu.dimension_semantics<arbitrary>], iteration_bounds = array<i64: 2, 2, 2>, scalar_prefetch = 0 : i64, scratch_operands = 3 : i64, tpu.core_type = #tpu.core_type<tc>, window_params = [{transform_indices = @transform_0, window_bounds = array<i64: 1, 4, 8, 8>}, {transform_indices = @transform_1, window_bounds = array<i64: 1, 4, 8, 8>}, {transform_indices = @transform_2, window_bounds = array<i64: 1, 4, 8, 8>}, {transform_indices = @transform_3, window_bounds = array<i64: 1, 4, 8, 8>}]} {
    %c0_i32 = arith.constant 0 : i32
    %0 = arith.cmpi eq, %arg2, %c0_i32 : i32
    %1 = arith.extui %0 : i1 to i32
    %c0_i32_0 = arith.constant 0 : i32
    %2 = arith.cmpi ne, %1, %c0_i32_0 : i32
    scf.if %2 {
      %cst_34 = arith.constant 0xFF800000 : f32
      %36 = vector.broadcast %cst_34 : f32 to vector<4x8x1xf32>
      %c0_35 = arith.constant 0 : index
      %c0_36 = arith.constant 0 : index
      %c0_37 = arith.constant 0 : index
      %37 = vector.load %arg7[%c0_35, %c0_36, %c0_37] : memref<4x8x1xf32, #tpu.memory_space<vmem>>, vector<4x8x1xf32>
      tpu.vector_store %arg7[%c0_35, %c0_36, %c0_37], %36 {strides = array<i32>} : memref<4x8x1xf32, #tpu.memory_space<vmem>>, vector<4x8x1xf32>,
      %cst_38 = arith.constant 0.000000e+00 : f32
      %38 = vector.broadcast %cst_38 : f32 to vector<4x8x1xf32>
      %c0_39 = arith.constant 0 : index
      %c0_40 = arith.constant 0 : index
      %c0_41 = arith.constant 0 : index
      %39 = vector.load %arg8[%c0_39, %c0_40, %c0_41] : memref<4x8x1xf32, #tpu.memory_space<vmem>>, vector<4x8x1xf32>
      tpu.vector_store %arg8[%c0_39, %c0_40, %c0_41], %38 {strides = array<i32>} : memref<4x8x1xf32, #tpu.memory_space<vmem>>, vector<4x8x1xf32>,
      %cst_42 = arith.constant 0.000000e+00 : f32
      %40 = vector.broadcast %cst_42 : f32 to vector<4x8x8xf32>
      %c0_43 = arith.constant 0 : index
      %c0_44 = arith.constant 0 : index
      %c0_45 = arith.constant 0 : index
      %41 = vector.load %arg9[%c0_43, %c0_44, %c0_45] : memref<4x8x8xf32, #tpu.memory_space<vmem>>, vector<4x8x8xf32>
      tpu.vector_store %arg9[%c0_43, %c0_44, %c0_45], %40 {strides = array<i32>} : memref<4x8x8xf32, #tpu.memory_space<vmem>>, vector<4x8x8xf32>,
    } else {
    }
    %c0 = arith.constant 0 : index
    %c0_1 = arith.constant 0 : index
    %c0_2 = arith.constant 0 : index
    %c0_3 = arith.constant 0 : index
    %3 = vector.load %arg3[%c0, %c0_1, %c0_2, %c0_3] : memref<1x4x8x8xbf16, #tpu.memory_space<vmem>>, vector<1x4x8x8xbf16>
    %4 = vector.shape_cast %3 : vector<1x4x8x8xbf16> to vector<4x8x8xbf16>
    %c0_4 = arith.constant 0 : index
    %c0_5 = arith.constant 0 : index
    %c0_6 = arith.constant 0 : index
    %c0_7 = arith.constant 0 : index
    %5 = vector.load %arg4[%c0_4, %c0_5, %c0_6, %c0_7] : memref<1x4x8x8xbf16, #tpu.memory_space<vmem>>, vector<1x4x8x8xbf16>
    %6 = vector.shape_cast %5 : vector<1x4x8x8xbf16> to vector<4x8x8xbf16>
    %c0_8 = arith.constant 0 : index
    %c0_9 = arith.constant 0 : index
    %c0_10 = arith.constant 0 : index
    %c0_11 = arith.constant 0 : index
    %7 = vector.load %arg5[%c0_8, %c0_9, %c0_10, %c0_11] : memref<1x4x8x8xbf16, #tpu.memory_space<vmem>>, vector<1x4x8x8xbf16>
    %8 = vector.shape_cast %7 : vector<1x4x8x8xbf16> to vector<4x8x8xbf16>
    "tpu.trace_start"() <{level = 10 : i32, message = "hqd,hkd->hqk"}> : () -> ()
    %cst = arith.constant dense<0.000000e+00> : vector<4x8x8xf32>
    %9 = tpu.matmul %4, %6, %cst {dimension_numbers = #tpu.dot_dimension_numbers<[2], [2], [1], [1], [0, 0, 0, 1, 1, 1], [0], [0]>} : vector<4x8x8xbf16>, vector<4x8x8xbf16>, vector<4x8x8xf32> -> vector<4x8x8xf32>
    "tpu.trace_stop"() : () -> ()
    %c0_12 = arith.constant 0 : index
    %c0_13 = arith.constant 0 : index
    %c0_14 = arith.constant 0 : index
    %10 = vector.load %arg7[%c0_12, %c0_13, %c0_14] : memref<4x8x1xf32, #tpu.memory_space<vmem>>, vector<4x8x1xf32>
    %cst_15 = arith.constant dense<0xFF800000> : vector<4x8xf32>
    %11 = vector.multi_reduction <maximumf>, %9, %cst_15 [2] : vector<4x8x8xf32> to vector<4x8xf32>
    %12 = vector.shape_cast %11 : vector<4x8xf32> to vector<4x8x1xf32>
    %13 = arith.maximumf %10, %12 : vector<4x8x1xf32>
    %14 = arith.subf %10, %13 : vector<4x8x1xf32>
    %15 = math.exp %14 : vector<4x8x1xf32>
    %16 = vector.broadcast %13 : vector<4x8x1xf32> to vector<4x8x8xf32>
    %17 = arith.subf %9, %16 : vector<4x8x8xf32>
    %18 = math.exp %17 : vector<4x8x8xf32>
    %c0_16 = arith.constant 0 : index
    %c0_17 = arith.constant 0 : index
    %c0_18 = arith.constant 0 : index
    %19 = vector.load %arg8[%c0_16, %c0_17, %c0_18] : memref<4x8x1xf32, #tpu.memory_space<vmem>>, vector<4x8x1xf32>
    %20 = arith.mulf %15, %19 : vector<4x8x1xf32>
    %cst_19 = arith.constant dense<0.000000e+00> : vector<4x8xf32>
    %21 = vector.multi_reduction <add>, %18, %cst_19 [2] : vector<4x8x8xf32> to vector<4x8xf32>
    %22 = vector.shape_cast %21 : vector<4x8xf32> to vector<4x8x1xf32>
    %23 = arith.addf %20, %22 : vector<4x8x1xf32>
    %c0_20 = arith.constant 0 : index
    %c0_21 = arith.constant 0 : index
    %c0_22 = arith.constant 0 : index
    %24 = vector.load %arg8[%c0_20, %c0_21, %c0_22] : memref<4x8x1xf32, #tpu.memory_space<vmem>>, vector<4x8x1xf32>
    tpu.vector_store %arg8[%c0_20, %c0_21, %c0_22], %23 {strides = array<i32>} : memref<4x8x1xf32, #tpu.memory_space<vmem>>, vector<4x8x1xf32>,
    %c0_23 = arith.constant 0 : index
    %c0_24 = arith.constant 0 : index
    %c0_25 = arith.constant 0 : index
    %25 = vector.load %arg9[%c0_23, %c0_24, %c0_25] : memref<4x8x8xf32, #tpu.memory_space<vmem>>, vector<4x8x8xf32>
    %26 = vector.broadcast %15 : vector<4x8x1xf32> to vector<4x8x8xf32>
    %27 = arith.mulf %26, %25 : vector<4x8x8xf32>
    %28 = arith.truncf %18 : vector<4x8x8xf32> to vector<4x8x8xbf16>
    "tpu.trace_start"() <{level = 10 : i32, message = "hqk,hkd->hqd"}> : () -> ()
    %cst_26 = arith.constant dense<0.000000e+00> : vector<4x8x8xf32>
    %29 = tpu.matmul %28, %8, %cst_26 {dimension_numbers = #tpu.dot_dimension_numbers<[2], [1], [1], [2], [0, 0, 0, 1, 1, 2], [0], [0]>} : vector<4x8x8xbf16>, vector<4x8x8xbf16>, vector<4x8x8xf32> -> vector<4x8x8xf32>
    "tpu.trace_stop"() : () -> ()
    %30 = arith.addf %27, %29 : vector<4x8x8xf32>
    %c0_27 = arith.constant 0 : index
    %c0_28 = arith.constant 0 : index
    %c0_29 = arith.constant 0 : index
    %31 = vector.load %arg9[%c0_27, %c0_28, %c0_29] : memref<4x8x8xf32, #tpu.memory_space<vmem>>, vector<4x8x8xf32>
    tpu.vector_store %arg9[%c0_27, %c0_28, %c0_29], %30 {strides = array<i32>} : memref<4x8x8xf32, #tpu.memory_space<vmem>>, vector<4x8x8xf32>,
    %c0_30 = arith.constant 0 : index
    %c0_31 = arith.constant 0 : index
    %c0_32 = arith.constant 0 : index
    %32 = vector.load %arg7[%c0_30, %c0_31, %c0_32] : memref<4x8x1xf32, #tpu.memory_space<vmem>>, vector<4x8x1xf32>
    tpu.vector_store %arg7[%c0_30, %c0_31, %c0_32], %13 {strides = array<i32>} : memref<4x8x1xf32, #tpu.memory_space<vmem>>, vector<4x8x1xf32>,
    %c1_i32 = arith.constant 1 : i32
    %33 = arith.cmpi eq, %arg2, %c1_i32 : i32
    %34 = arith.extui %33 : i1 to i32
    %c0_i32_33 = arith.constant 0 : i32
    %35 = arith.cmpi ne, %34, %c0_i32_33 : i32
    scf.if %35 {
      %c0_34 = arith.constant 0 : index
      %c0_35 = arith.constant 0 : index
      %c0_36 = arith.constant 0 : index
      %36 = vector.load %arg8[%c0_34, %c0_35, %c0_36] : memref<4x8x1xf32, #tpu.memory_space<vmem>>, vector<4x8x1xf32>
      %37 = tpu.reciprocal %36 {approx = true} : vector<4x8x1xf32> -> vector<4x8x1xf32>
      %c0_37 = arith.constant 0 : index
      %c0_38 = arith.constant 0 : index
      %c0_39 = arith.constant 0 : index
      %38 = vector.load %arg9[%c0_37, %c0_38, %c0_39] : memref<4x8x8xf32, #tpu.memory_space<vmem>>, vector<4x8x8xf32>
      %39 = vector.broadcast %37 : vector<4x8x1xf32> to vector<4x8x8xf32>
      %40 = arith.mulf %38, %39 : vector<4x8x8xf32>
      %41 = arith.truncf %40 : vector<4x8x8xf32> to vector<4x8x8xbf16>
      %c0_40 = arith.constant 0 : index
      %c0_41 = arith.constant 0 : index
      %c0_42 = arith.constant 0 : index
      %c0_43 = arith.constant 0 : index
      %42 = vector.load %arg6[%c0_40, %c0_41, %c0_42, %c0_43] : memref<1x4x8x8xbf16, #tpu.memory_space<vmem>>, vector<1x4x8x8xbf16>
      %43 = vector.shape_cast %42 : vector<1x4x8x8xbf16> to vector<4x8x8xbf16>
      %44 = vector.shape_cast %41 : vector<4x8x8xbf16> to vector<1x4x8x8xbf16>
      tpu.vector_store %arg6[%c0_40, %c0_41, %c0_42, %c0_43], %44 {strides = array<i32>} : memref<1x4x8x8xbf16, #tpu.memory_space<vmem>>, vector<1x4x8x8xbf16>,
    } else {
    }
    return
  }
  func.func @transform_0(%arg0: i32, %arg1: i32, %arg2: i32) -> (i32, i32, i32, i32) {
    %c0_i32 = arith.constant 0 : i32
    %c0_i32_0 = arith.constant 0 : i32
    %c0_i32_1 = arith.constant 0 : i32
    return %arg0, %c0_i32, %arg1, %c0_i32_0 : i32, i32, i32, i32
  }
  func.func @transform_1(%arg0: i32, %arg1: i32, %arg2: i32) -> (i32, i32, i32, i32) {
    %c0_i32 = arith.constant 0 : i32
    %c0_i32_0 = arith.constant 0 : i32
    %c0_i32_1 = arith.constant 0 : i32
    return %arg0, %c0_i32, %arg2, %c0_i32_0 : i32, i32, i32, i32
  }
  func.func @transform_2(%arg0: i32, %arg1: i32, %arg2: i32) -> (i32, i32, i32, i32) {
    %c0_i32 = arith.constant 0 : i32
    %c0_i32_0 = arith.constant 0 : i32
    %c0_i32_1 = arith.constant 0 : i32
    return %arg0, %c0_i32, %arg2, %c0_i32_0 : i32, i32, i32, i32
  }
  func.func @transform_3(%arg0: i32, %arg1: i32, %arg2: i32) -> (i32, i32, i32, i32) {
    %c0_i32 = arith.constant 0 : i32
    %c0_i32_0 = arith.constant 0 : i32
    %c0_i32_1 = arith.constant 0 : i32
    return %arg0, %c0_i32, %arg1, %c0_i32_0 : i32, i32, i32, i32
  }
}

</mosaic_0001>

<llo_original>
// kernel: tpu_custom_call.1
$region0: #{tpu_custom_call.1}
  #allocation0 [shape = 'u32[]', space=smem, size = 0x4, offset = 0x4, fixed_abs, tag = 'smem constant byte address 0x4 - core index']
  #allocation1 [shape = 'u32[144,128]{1,0:T(1,128)}', space=vmem, size = 0x12000, scoped, tag = 'internal scratch']
  #allocation2 [shape = 'f32[4,8,1]{2,1,0:T(8,128)}', space=vmem, size = 0x4000, scoped, tag = 'scratch operand']
  #allocation3 [shape = 'f32[4,8,1]{2,1,0:T(8,128)}', space=vmem, size = 0x4000, scoped, tag = 'scratch operand']
  #allocation4 [shape = 'f32[4,8,8]{2,1,0:T(8,128)}', space=vmem, size = 0x4000, scoped, tag = 'scratch operand']
  %s0 = inlined_call_operand.hbm [shape: bf16[2,4,16,8], index: 0, kind: input, shape index: {}]
  %s1 = inlined_call_operand.hbm [shape: bf16[2,4,16,8], index: 1, kind: input, shape index: {}]
  %s2 = inlined_call_operand.hbm [shape: bf16[2,4,16,8], index: 2, kind: input, shape index: {}]
  %s3 = inlined_call_operand.hbm [shape: bf16[2,4,16,8], index: 3, kind: output, shape index: {}]
  %s4 = sld [smem:[#allocation0]]
  $region65: #{tpu_custom_call.1} parent=0
    _
  %s6 = ssub.s32 1, %s4
  %s7 = scalar_select 0, %s6, %s4
  $region1: #{tpu_custom_call.1} parent=0
    #allocation5 [shape = 'u8[16384]{0}', space=vmem, size = 0x4000, scoped, tag = 'input window, operand 0']
    #allocation6 [shape = 's32[2]{0}', space=sflag, size = 0x8, scoped, tag = 'scoped memory for tpu_custom_call.1']
    #allocation7 [shape = 's32[2]{0}', space=sflag, size = 0x8, scoped, tag = 'scoped memory for tpu_custom_call.1']
    #allocation8 [shape = 'u8[16384]{0}', space=vmem, size = 0x4000, scoped, tag = 'input window, operand 1']
    #allocation9 [shape = 's32[2]{0}', space=sflag, size = 0x8, scoped, tag = 'scoped memory for tpu_custom_call.1']
    #allocation10 [shape = 'u8[16384]{0}', space=vmem, size = 0x4000, scoped, tag = 'input window, operand 2']
    #allocation11 [shape = 'u8[16384]{0}', space=vmem, size = 0x4000, scoped, tag = 'output window, operand 0']
    %8 = vsyncpa [#allocation6], 0
    %s9 = scalar_lea.sflag [#allocation6], 1
    %10 = vsyncpa %s9, 0
    %11 = vsyncpa [#allocation9], 0
    %s12 = scalar_lea.sflag [#allocation9], 1
    %13 = vsyncpa %s12, 0
    %14 = vsyncpa [#allocation7], 0
    %s15 = scalar_lea.sflag [#allocation7], 1
    %16 = vsyncpa %s15, 0
    loop: start=0, step=1, limit=10
    $region2: #{tpu_custom_call.1} parent=1 // loop_pre_header
      _
    $region3: #{tpu_custom_call.1} parent=1 // loop_header
      %s18 = sphi 0, %s22
      %p19 = scmp.ge.s32.totalorder %s18, 10
      %s25 = sphi 0, %s44
      %s26 = sphi 0, %s40
      %s27 = sphi 0, %s36
      %s28 = sphi 0, %s25
      %s29 = sphi 0, %s26
      %s30 = sphi 0, %s27
      %s31 = sphi 0, %s28
      %s32 = sphi 0, %s29
      %s33 = sphi 0, %s30
      %s49 = sphi 0, %s51
      %s52 = sphi 0, %s49
      %s53 = sphi 0, %s52
      %s69 = sphi 0, %s53
      %s77 = sphi 0, %s79
      %s80 = sphi 0, %s77
      %s81 = sphi 0, %s80
      %s97 = sphi 0, %s81
      %s105 = sphi 0, %s107
      %s108 = sphi 0, %s105
      %s109 = sphi 0, %s108
      %s125 = sphi 0, %s109
      %s133 = sphi 0, %s135
      %s136 = sphi 0, %s133
      %s137 = sphi 0, %s136
      %s153 = sphi 0, %s137
    $region4: #{tpu_custom_call.1} parent=1 // loop_header_branch
      %21 = sbr.rel (%p19) target = $region8
    $region5: #{tpu_custom_call.1} parent=1 // loop_body
      %s23 = ssub.s32 %s18, 1
      %s24 = ssub.s32 %s18, 2
      %s34 = sadd.s32 1, %s27
      %p35 = scmp.ge.s32.totalorder %s34, 2
      %s36 = scalar_select %p35, 0, %s34
      %s37 = sadd.s32 1, %s26
      %s38 = scalar_select %p35, %s37, %s26
      %p39 = scmp.ge.s32.totalorder %s38, 2
      %s40 = scalar_select %p39, 0, %s38
      %s41 = sadd.s32 1, %s25
      %s42 = scalar_select %p39, %s41, %s25
      %p43 = scmp.ge.s32.totalorder %s42, 2
      %s44 = scalar_select %p43, 0, %s42
      %s45 = ssub.s32 %s25, %s44
      %s46 = ssub.s32 %s26, %s40
      %s47 = sor.u32 %s45, %s46
      %p48 = scmp.eq.s32.totalorder %s47, 0
      %s50 = sadd.s32 %s49, 1
      %s51 = scalar_select %p48, %s49, %s50
      %p54 = pneg %p48
      %p55 = scmp.eq.s32.totalorder %s18, 7
      %p56 = por %p54, %p55
      %p57 = scmp.ne.s32.totalorder %s49, %s52
      %p58 = scmp.eq.s32.totalorder %s18, 0
      %p59 = por %p57, %p58
      %p60 = scmp.ne.s32.totalorder %s49, %s52
      %p61 = scmp.eq.s32.totalorder %s23, 7
      %p62 = por %p60, %p61
      %p63 = scmp.ne.s32.totalorder %s52, %s53
      %p64 = scmp.eq.s32.totalorder %s23, 0
      %p65 = por %p63, %p64
      %p66 = scmp.ne.s32.totalorder %s52, %s53
      %p67 = scmp.eq.s32.totalorder %s24, 7
      %p68 = por %p66, %p67
      %p70 = scmp.ne.s32.totalorder %s53, %s69
      %p71 = scmp.eq.s32.totalorder %s24, 0
      %p72 = por %p70, %p71
      %s73 = ssub.s32 %s25, %s44
      %s74 = ssub.s32 %s27, %s36
      %s75 = sor.u32 %s73, %s74
      %p76 = scmp.eq.s32.totalorder %s75, 0
      %s78 = sadd.s32 %s77, 1
      %s79 = scalar_select %p76, %s77, %s78
      %p82 = pneg %p76
      %p83 = scmp.eq.s32.totalorder %s18, 7
      %p84 = por %p82, %p83
      %p85 = scmp.ne.s32.totalorder %s77, %s80
      %p86 = scmp.eq.s32.totalorder %s18, 0
      %p87 = por %p85, %p86
      %p88 = scmp.ne.s32.totalorder %s77, %s80
      %p89 = scmp.eq.s32.totalorder %s23, 7
      %p90 = por %p88, %p89
      %p91 = scmp.ne.s32.totalorder %s80, %s81
      %p92 = scmp.eq.s32.totalorder %s23, 0
      %p93 = por %p91, %p92
      %p94 = scmp.ne.s32.totalorder %s80, %s81
      %p95 = scmp.eq.s32.totalorder %s24, 7
      %p96 = por %p94, %p95
      %p98 = scmp.ne.s32.totalorder %s81, %s97
      %p99 = scmp.eq.s32.totalorder %s24, 0
      %p100 = por %p98, %p99
      %s101 = ssub.s32 %s25, %s44
      %s102 = ssub.s32 %s27, %s36
      %s103 = sor.u32 %s101, %s102
      %p104 = scmp.eq.s32.totalorder %s103, 0
      %s106 = sadd.s32 %s105, 1
      %s107 = scalar_select %p104, %s105, %s106
      %p110 = pneg %p104
      %p111 = scmp.eq.s32.totalorder %s18, 7
      %p112 = por %p110, %p111
      %p113 = scmp.ne.s32.totalorder %s105, %s108
      %p114 = scmp.eq.s32.totalorder %s18, 0
      %p115 = por %p113, %p114
      %p116 = scmp.ne.s32.totalorder %s105, %s108
      %p117 = scmp.eq.s32.totalorder %s23, 7
      %p118 = por %p116, %p117
      %p119 = scmp.ne.s32.totalorder %s108, %s109
      %p120 = scmp.eq.s32.totalorder %s23, 0
      %p121 = por %p119, %p120
      %p122 = scmp.ne.s32.totalorder %s108, %s109
      %p123 = scmp.eq.s32.totalorder %s24, 7
      %p124 = por %p122, %p123
      %p126 = scmp.ne.s32.totalorder %s109, %s125
      %p127 = scmp.eq.s32.totalorder %s24, 0
      %p128 = por %p126, %p127
      %s129 = ssub.s32 %s25, %s44
      %s130 = ssub.s32 %s26, %s40
      %s131 = sor.u32 %s129, %s130
      %p132 = scmp.eq.s32.totalorder %s131, 0
      %s134 = sadd.s32 %s133, 1
      %s135 = scalar_select %p132, %s133, %s134
      %p138 = pneg %p132
      %p139 = scmp.eq.s32.totalorder %s18, 7
      %p140 = por %p138, %p139
      %p141 = scmp.ne.s32.totalorder %s133, %s136
      %p142 = scmp.eq.s32.totalorder %s18, 0
      %p143 = por %p141, %p142
      %p144 = scmp.ne.s32.totalorder %s133, %s136
      %p145 = scmp.eq.s32.totalorder %s23, 7
      %p146 = por %p144, %p145
      %p147 = scmp.ne.s32.totalorder %s136, %s137
      %p148 = scmp.eq.s32.totalorder %s23, 0
      %p149 = por %p147, %p148
      %p150 = scmp.ne.s32.totalorder %s136, %s137
      %p151 = scmp.eq.s32.totalorder %s24, 7
      %p152 = por %p150, %p151
      %p154 = scmp.ne.s32.totalorder %s137, %s153
      %p155 = scmp.eq.s32.totalorder %s24, 0
      %p156 = por %p154, %p155
      %p157 = scmp.le.s32.totalorder 1, %s18
      %p158 = scmp.lt.s32.totalorder %s18, 9
      %p159 = pnand %p157, %p158
      %p160 = pneg %p159
      // Predicated region
      $region9: #{tpu_custom_call.1} parent=5 // pred_check
        _
      $region10: #{tpu_custom_call.1} parent=5 // pred_check_branch
        %162 = sbr.rel (%p159) target = $region12
      $region11: #{tpu_custom_call.1} parent=5 // pred_region
        %s163 = ssub.s32 %s18, 1
      $region12: #{tpu_custom_call.1} parent=5 // pred_fallthru
        _
      %p164 = scmp.lt.s32.totalorder %s18, 8
      // Predicated region
      $region13: #{tpu_custom_call.1} parent=5 // pred_check
        %p165 = pneg %p164
      $region14: #{tpu_custom_call.1} parent=5 // pred_check_branch
        %167 = sbr.rel (%p165) target = $region16
      $region15: #{tpu_custom_call.1} parent=5 // pred_region
        // Predicated region
        $region17: #{tpu_custom_call.1} parent=15 // pred_check
          %p168 = pneg %p59
        $region18: #{tpu_custom_call.1} parent=15 // pred_check_branch
          %170 = sbr.rel (%p168) target = $region20
        $region19: #{tpu_custom_call.1} parent=15 // pred_region
          %s171 = sand.u32 %s49, 1
          %s172 = scalar_lea.sflag [#allocation6], %s171
          %s173 = sand.u32 %s49, 1
          %s174 = smul.addr %s173, 16
          %s175 = scalar_lea.vmem [#allocation5], %s174
          %s177 = ssub.s32 256, 256
          %178 = vsyncadd %s172, %s177
          %s179 = smul.addr %s25, 8
          %s180 = sadd.s32 %s26, %s179
          %s181 = smul.addr %s180, 64
          %s182 = scalar_lea.hbm %s0, %s181
          %s183 = sshll.u32 %s175, 4
          %s184 = int_to_ptr.vmem [resolvable:$true] %s183
          %189 = dma.hbm_to_vmem [thread:$0]  %s182, 256, %s184, %s172, 128, 64, 4
        $region20: #{tpu_custom_call.1} parent=15 // pred_fallthru
          _
        // Predicated region
        $region21: #{tpu_custom_call.1} parent=15 // pred_check
          %p190 = pneg %p87
        $region22: #{tpu_custom_call.1} parent=15 // pred_check_branch
          %192 = sbr.rel (%p190) target = $region24
        $region23: #{tpu_custom_call.1} parent=15 // pred_region
          %s193 = sand.u32 %s18, 1
          %s194 = scalar_lea.sflag [#allocation9], %s193
          %s195 = sand.u32 %s77, 1
          %s196 = smul.addr %s195, 16
          %s197 = scalar_lea.vmem [#allocation8], %s196
          %s199 = ssub.s32 256, 256
          %200 = vsyncadd %s194, %s199
          %s201 = smul.addr %s25, 8
          %s202 = sadd.s32 %s27, %s201
          %s203 = smul.addr %s202, 64
          %s204 = scalar_lea.hbm %s1, %s203
          %s205 = sshll.u32 %s197, 4
          %s206 = int_to_ptr.vmem [resolvable:$true] %s205
          %211 = dma.hbm_to_vmem [thread:$0]  %s204, 256, %s206, %s194, 128, 64, 4
        $region24: #{tpu_custom_call.1} parent=15 // pred_fallthru
          _
        // Predicated region
        $region25: #{tpu_custom_call.1} parent=15 // pred_check
          %p212 = pneg %p115
        $region26: #{tpu_custom_call.1} parent=15 // pred_check_branch
          %214 = sbr.rel (%p212) target = $region28
        $region27: #{tpu_custom_call.1} parent=15 // pred_region
          %s215 = sand.u32 %s18, 1
          %s216 = scalar_lea.sflag [#allocation9], %s215
          %s217 = sand.u32 %s105, 1
          %s218 = smul.addr %s217, 16
          %s219 = scalar_lea.vmem [#allocation10], %s218
          %s221 = ssub.s32 256, 256
          %222 = vsyncadd %s216, %s221
          %s223 = smul.addr %s25, 8
          %s224 = sadd.s32 %s27, %s223
          %s225 = smul.addr %s224, 64
          %s226 = scalar_lea.hbm %s2, %s225
          %s227 = sshll.u32 %s219, 4
          %s228 = int_to_ptr.vmem [resolvable:$true] %s227
          %233 = dma.hbm_to_vmem [thread:$0]  %s226, 256, %s228, %s216, 128, 64, 4
        $region28: #{tpu_custom_call.1} parent=15 // pred_fallthru
          _
      $region16: #{tpu_custom_call.1} parent=5 // pred_fallthru
        _
      %p234 = scmp.le.s32.totalorder 1, %s18
      %p235 = scmp.lt.s32.totalorder %s18, 9
      %p236 = pnand %p234, %p235
      %p237 = pneg %p236
      // Predicated region
      $region29: #{tpu_custom_call.1} parent=5 // pred_check
        _
      $region30: #{tpu_custom_call.1} parent=5 // pred_check_branch
        %239 = sbr.rel (%p236) target = $region32
      $region31: #{tpu_custom_call.1} parent=5 // pred_region
        %s240 = ssub.s32 %s18, 1
        %s241 = sand.u32 %s52, 1
        %s242 = scalar_lea.sflag [#allocation6], %s241
        %s243 = sand.u32 %s52, 1
        %s244 = smul.addr %s243, 16
        %s245 = scalar_lea.vmem [#allocation5], %s244
        // Predicated region
        $region33: #{tpu_custom_call.1} parent=31 // pred_check
          %p246 = pneg %p65
        $region34: #{tpu_custom_call.1} parent=31 // pred_check_branch
          %248 = sbr.rel (%p246) target = $region36
        $region35: #{tpu_custom_call.1} parent=31 // pred_region
          %249 = dma.done %s242, 256
        $region36: #{tpu_custom_call.1} parent=31 // pred_fallthru
          _
        %s250 = sand.u32 %s23, 1
        %s251 = scalar_lea.sflag [#allocation9], %s250
        %s252 = sand.u32 %s80, 1
        %s253 = smul.addr %s252, 16
        %s254 = scalar_lea.vmem [#allocation8], %s253
        // Predicated region
        $region37: #{tpu_custom_call.1} parent=31 // pred_check
          %p255 = pneg %p93
        $region38: #{tpu_custom_call.1} parent=31 // pred_check_branch
          %257 = sbr.rel (%p255) target = $region40
        $region39: #{tpu_custom_call.1} parent=31 // pred_region
          %258 = dma.done %s251, 256
        $region40: #{tpu_custom_call.1} parent=31 // pred_fallthru
          _
        %s259 = sand.u32 %s23, 1
        %s260 = scalar_lea.sflag [#allocation9], %s259
        %s261 = sand.u32 %s108, 1
        %s262 = smul.addr %s261, 16
        %s263 = scalar_lea.vmem [#allocation10], %s262
        // Predicated region
        $region41: #{tpu_custom_call.1} parent=31 // pred_check
          %p264 = pneg %p121
        $region42: #{tpu_custom_call.1} parent=31 // pred_check_branch
          %266 = sbr.rel (%p264) target = $region44
        $region43: #{tpu_custom_call.1} parent=31 // pred_region
          %267 = dma.done %s260, 256
        $region44: #{tpu_custom_call.1} parent=31 // pred_fallthru
          _
        %s268 = sand.u32 %s52, 1
        %s269 = scalar_lea.sflag [#allocation6], %s268
        %s270 = sand.u32 %s52, 1
        %s271 = smul.addr %s270, 16
        %s272 = scalar_lea.vmem [#allocation5], %s271
        %p273 = pneg %p65
        %p274 = pneg %p62
        %s275 = sand.u32 %s23, 1
        %s276 = scalar_lea.sflag [#allocation9], %s275
        %s277 = sand.u32 %s80, 1
        %s278 = smul.addr %s277, 16
        %s279 = scalar_lea.vmem [#allocation8], %s278
        %p280 = pneg %p93
        %p281 = pneg %p90
        %s282 = sand.u32 %s23, 1
        %s283 = scalar_lea.sflag [#allocation9], %s282
        %s284 = sand.u32 %s108, 1
        %s285 = smul.addr %s284, 16
        %s286 = scalar_lea.vmem [#allocation10], %s285
        %p287 = pneg %p121
        %p288 = pneg %p118
        %p289 = pneg %p149
        %p290 = pneg %p146
        %s291 = sand.u32 %s136, 1
        %s292 = scalar_lea.sflag [#allocation7], %s291
        %s293 = sand.u32 %s136, 1
        %s294 = smul.addr %s293, 16
        %s295 = scalar_lea.vmem [#allocation11], %s294
        %p297 = scmp.eq.s32.totalorder %s30, 0
        // Predicated region
        $region45: #{tpu_custom_call.1} parent=31 // pred_check
          %p298 = pneg %p297
        $region46: #{tpu_custom_call.1} parent=31 // pred_check_branch
          %300 = sbr.rel (%p298) target = $region48
        $region47: #{tpu_custom_call.1} parent=31 // pred_region
          %vm301 = vcmask 7168
          %302 = vst.msk [vmem:[#allocation2] sm:$0xff] %vm301, -inf
          %303 = vst.msk [vmem:[#allocation2 + $0x8] sm:$0xff] %vm301, -inf
          %304 = vst.msk [vmem:[#allocation2 + $0x10] sm:$0xff] %vm301, -inf
          %305 = vst.msk [vmem:[#allocation2 + $0x18] sm:$0xff] %vm301, -inf
          %306 = vst.msk [vmem:[#allocation3] sm:$0xff] %vm301, 0.0
          %307 = vst.msk [vmem:[#allocation3 + $0x8] sm:$0xff] %vm301, 0.0
          %308 = vst.msk [vmem:[#allocation3 + $0x10] sm:$0xff] %vm301, 0.0
          %309 = vst.msk [vmem:[#allocation3 + $0x18] sm:$0xff] %vm301, 0.0
          %vm310 = vcmask 64512
          %311 = vst.msk [vmem:[#allocation4] sm:$0xff] %vm310, 0.0
          %312 = vst.msk [vmem:[#allocation4 + $0x8] sm:$0xff] %vm310, 0.0
          %313 = vst.msk [vmem:[#allocation4 + $0x10] sm:$0xff] %vm310, 0.0
          %314 = vst.msk [vmem:[#allocation4 + $0x18] sm:$0xff] %vm310, 0.0
        $region48: #{tpu_custom_call.1} parent=31 // pred_fallthru
          _
        %v315 = vld [vmem:[%s245] sm:$0xf]
        %v316 = vld [vmem:[%s245 + $0x4] sm:$0xf]
        %v317 = vld [vmem:[%s245 + $0x8] sm:$0xf]
        %v318 = vld [vmem:[%s245 + $0xc] sm:$0xf]
        %v319 = vld [vmem:[%s254] sm:$0xf]
        %v320 = vld [vmem:[%s254 + $0x4] sm:$0xf]
        %v321 = vld [vmem:[%s254 + $0x8] sm:$0xf]
        %v322 = vld [vmem:[%s254 + $0xc] sm:$0xf]
        %v323 = vld [vmem:[%s263] sm:$0xf]
        %v324 = vld [vmem:[%s263 + $0x4] sm:$0xf]
        %v325 = vld [vmem:[%s263 + $0x8] sm:$0xf]
        %v326 = vld [vmem:[%s263 + $0xc] sm:$0xf]
        %vm327 = vcmask 64512
        %v329 = vsel %vm327, %v315, 0
        %v332 = vsel %vm327, %v319, 0
        %334 = vmatprep.subr.bf16.mxu0 0
        %335 = vmatpush1.bf16.xpose.msra.mxu0 %v332
        %336 = vmatprep.subr.bf16.mxu0 0
        %337 = vmatpush1.bf16.xpose.msra.mxu0 0
        %338 = vmatprep.subr.bf16.mxu0 0
        %339 = vmatpush1.bf16.xpose.msra.mxu0 0
        %340 = vmatprep.subr.bf16.mxu0 0
        %341 = vmatpush1.bf16.xpose.msra.mxu0 0
        %342 = vmatprep.subr.bf16.mxu0 0
        %343 = vmatpush1.bf16.xpose.msra.mxu0 0
        %344 = vmatprep.subr.bf16.mxu0 0
        %345 = vmatpush1.bf16.xpose.msra.mxu0 0
        %346 = vmatprep.subr.bf16.mxu0 0
        %347 = vmatpush1.bf16.xpose.msra.mxu0 0
        %348 = vmatprep.subr.bf16.mxu0 0
        %349 = vmatpush1.bf16.xpose.msra.mxu0 0
        %350 = vmatprep.subr.bf16.mxu0 0
        %351 = vmatpush1.bf16.xpose.msra.mxu0 0
        %352 = vmatprep.subr.bf16.mxu0 0
        %353 = vmatpush1.bf16.xpose.msra.mxu0 0
        %354 = vmatprep.subr.bf16.mxu0 0
        %355 = vmatpush1.bf16.xpose.msra.mxu0 0
        %356 = vmatprep.subr.bf16.mxu0 0
        %357 = vmatpush1.bf16.xpose.msra.mxu0 0
        %358 = vmatprep.subr.bf16.mxu0 0
        %359 = vmatpush1.bf16.xpose.msra.mxu0 0
        %360 = vmatprep.subr.bf16.mxu0 0
        %361 = vmatpush1.bf16.xpose.msra.mxu0 0
        %362 = vmatprep.subr.bf16.mxu0 0
        %363 = vmatpush1.bf16.xpose.msra.mxu0 0
        %364 = vmatprep.subr.bf16.mxu0 0
        %365 = vmatpush1.bf16.xpose.msra.mxu0 0
        %366 = vmatprep.mubr.bf16.mxu0 0
        %367 = vmatmul.mubr.bf16.gmra.mrb[0].mxu0 %v329
        %v368 = vpop.f32.mrb[0].mxu0
        %v369 = vadd.f32 0.0, %v368
        %v370 = vpop.f32.mrb[0].mxu0
        %v371 = vpop.f32.mrb[0].mxu0
        %v372 = vpop.f32.mrb[0].mxu0
        %373 = vdwg.mxu0
        %v375 = vsel %vm327, %v316, 0
        %v378 = vsel %vm327, %v320, 0
        %380 = vmatprep.subr.bf16.mxu0 0
        %381 = vmatpush1.bf16.xpose.msra.mxu0 %v378
        %382 = vmatprep.subr.bf16.mxu0 0
        %383 = vmatpush1.bf16.xpose.msra.mxu0 0
        %384 = vmatprep.subr.bf16.mxu0 0
        %385 = vmatpush1.bf16.xpose.msra.mxu0 0
        %386 = vmatprep.subr.bf16.mxu0 0
        %387 = vmatpush1.bf16.xpose.msra.mxu0 0
        %388 = vmatprep.subr.bf16.mxu0 0
        %389 = vmatpush1.bf16.xpose.msra.mxu0 0
        %390 = vmatprep.subr.bf16.mxu0 0
        %391 = vmatpush1.bf16.xpose.msra.mxu0 0
        %392 = vmatprep.subr.bf16.mxu0 0
        %393 = vmatpush1.bf16.xpose.msra.mxu0 0
        %394 = vmatprep.subr.bf16.mxu0 0
        %395 = vmatpush1.bf16.xpose.msra.mxu0 0
        %396 = vmatprep.subr.bf16.mxu0 0
        %397 = vmatpush1.bf16.xpose.msra.mxu0 0
        %398 = vmatprep.subr.bf16.mxu0 0
        %399 = vmatpush1.bf16.xpose.msra.mxu0 0
        %400 = vmatprep.subr.bf16.mxu0 0
        %401 = vmatpush1.bf16.xpose.msra.mxu0 0
        %402 = vmatprep.subr.bf16.mxu0 0
        %403 = vmatpush1.bf16.xpose.msra.mxu0 0
        %404 = vmatprep.subr.bf16.mxu0 0
        %405 = vmatpush1.bf16.xpose.msra.mxu0 0
        %406 = vmatprep.subr.bf16.mxu0 0
        %407 = vmatpush1.bf16.xpose.msra.mxu0 0
        %408 = vmatprep.subr.bf16.mxu0 0
        %409 = vmatpush1.bf16.xpose.msra.mxu0 0
        %410 = vmatprep.subr.bf16.mxu0 0
        %411 = vmatpush1.bf16.xpose.msra.mxu0 0
        %412 = vmatprep.mubr.bf16.mxu0 0
        %413 = vmatmul.mubr.bf16.gmra.mrb[0].mxu0 %v375
        %v414 = vpop.f32.mrb[0].mxu0
        %v415 = vadd.f32 0.0, %v414
        %v416 = vpop.f32.mrb[0].mxu0
        %v417 = vpop.f32.mrb[0].mxu0
        %v418 = vpop.f32.mrb[0].mxu0
        %419 = vdwg.mxu0
        %v421 = vsel %vm327, %v317, 0
        %v424 = vsel %vm327, %v321, 0
        %426 = vmatprep.subr.bf16.mxu0 0
        %427 = vmatpush1.bf16.xpose.msra.mxu0 %v424
        %428 = vmatprep.subr.bf16.mxu0 0
        %429 = vmatpush1.bf16.xpose.msra.mxu0 0
        %430 = vmatprep.subr.bf16.mxu0 0
        %431 = vmatpush1.bf16.xpose.msra.mxu0 0
        %432 = vmatprep.subr.bf16.mxu0 0
        %433 = vmatpush1.bf16.xpose.msra.mxu0 0
        %434 = vmatprep.subr.bf16.mxu0 0
        %435 = vmatpush1.bf16.xpose.msra.mxu0 0
        %436 = vmatprep.subr.bf16.mxu0 0
        %437 = vmatpush1.bf16.xpose.msra.mxu0 0
        %438 = vmatprep.subr.bf16.mxu0 0
        %439 = vmatpush1.bf16.xpose.msra.mxu0 0
        %440 = vmatprep.subr.bf16.mxu0 0
        %441 = vmatpush1.bf16.xpose.msra.mxu0 0
        %442 = vmatprep.subr.bf16.mxu0 0
        %443 = vmatpush1.bf16.xpose.msra.mxu0 0
        %444 = vmatprep.subr.bf16.mxu0 0
        %445 = vmatpush1.bf16.xpose.msra.mxu0 0
        %446 = vmatprep.subr.bf16.mxu0 0
        %447 = vmatpush1.bf16.xpose.msra.mxu0 0
        %448 = vmatprep.subr.bf16.mxu0 0
        %449 = vmatpush1.bf16.xpose.msra.mxu0 0
        %450 = vmatprep.subr.bf16.mxu0 0
        %451 = vmatpush1.bf16.xpose.msra.mxu0 0
        %452 = vmatprep.subr.bf16.mxu0 0
        %453 = vmatpush1.bf16.xpose.msra.mxu0 0
        %454 = vmatprep.subr.bf16.mxu0 0
        %455 = vmatpush1.bf16.xpose.msra.mxu0 0
        %456 = vmatprep.subr.bf16.mxu0 0
        %457 = vmatpush1.bf16.xpose.msra.mxu0 0
        %458 = vmatprep.mubr.bf16.mxu0 0
        %459 = vmatmul.mubr.bf16.gmra.mrb[0].mxu0 %v421
        %v460 = vpop.f32.mrb[0].mxu0
        %v461 = vadd.f32 0.0, %v460
        %v462 = vpop.f32.mrb[0].mxu0
        %v463 = vpop.f32.mrb[0].mxu0
        %v464 = vpop.f32.mrb[0].mxu0
        %465 = vdwg.mxu0
        %v467 = vsel %vm327, %v318, 0
        %v470 = vsel %vm327, %v322, 0
        %472 = vmatprep.subr.bf16.mxu0 0
        %473 = vmatpush1.bf16.xpose.msra.mxu0 %v470
        %474 = vmatprep.subr.bf16.mxu0 0
        %475 = vmatpush1.bf16.xpose.msra.mxu0 0
        %476 = vmatprep.subr.bf16.mxu0 0
        %477 = vmatpush1.bf16.xpose.msra.mxu0 0
        %478 = vmatprep.subr.bf16.mxu0 0
        %479 = vmatpush1.bf16.xpose.msra.mxu0 0
        %480 = vmatprep.subr.bf16.mxu0 0
        %481 = vmatpush1.bf16.xpose.msra.mxu0 0
        %482 = vmatprep.subr.bf16.mxu0 0
        %483 = vmatpush1.bf16.xpose.msra.mxu0 0
        %484 = vmatprep.subr.bf16.mxu0 0
        %485 = vmatpush1.bf16.xpose.msra.mxu0 0
        %486 = vmatprep.subr.bf16.mxu0 0
        %487 = vmatpush1.bf16.xpose.msra.mxu0 0
        %488 = vmatprep.subr.bf16.mxu0 0
        %489 = vmatpush1.bf16.xpose.msra.mxu0 0
        %490 = vmatprep.subr.bf16.mxu0 0
        %491 = vmatpush1.bf16.xpose.msra.mxu0 0
        %492 = vmatprep.subr.bf16.mxu0 0
        %493 = vmatpush1.bf16.xpose.msra.mxu0 0
        %494 = vmatprep.subr.bf16.mxu0 0
        %495 = vmatpush1.bf16.xpose.msra.mxu0 0
        %496 = vmatprep.subr.bf16.mxu0 0
        %497 = vmatpush1.bf16.xpose.msra.mxu0 0
        %498 = vmatprep.subr.bf16.mxu0 0
        %499 = vmatpush1.bf16.xpose.msra.mxu0 0
        %500 = vmatprep.subr.bf16.mxu0 0
        %501 = vmatpush1.bf16.xpose.msra.mxu0 0
        %502 = vmatprep.subr.bf16.mxu0 0
        %503 = vmatpush1.bf16.xpose.msra.mxu0 0
        %504 = vmatprep.mubr.bf16.mxu0 0
        %505 = vmatmul.mubr.bf16.gmra.mrb[0].mxu0 %v467
        %v506 = vpop.f32.mrb[0].mxu0
        %v507 = vadd.f32 0.0, %v506
        %v508 = vpop.f32.mrb[0].mxu0
        %v509 = vpop.f32.mrb[0].mxu0
        %v510 = vpop.f32.mrb[0].mxu0
        %511 = vdwg.mxu0
        %v512 = vld [vmem:[#allocation2] sm:$0xff]
        %v513 = vld [vmem:[#allocation2 + $0x8] sm:$0xff]
        %v514 = vld [vmem:[#allocation2 + $0x10] sm:$0xff]
        %v515 = vld [vmem:[#allocation2 + $0x18] sm:$0xff]
        %v516 = vsel %vm327, %v369, -inf
        %517 = vmax.xlane.f32.xlu0 %v516
        %v518 = vpop.xlane.xlu0 %517
        %v519 = vsel %vm327, %v415, -inf
        %520 = vmax.xlane.f32.xlu0 %v519
        %v521 = vpop.xlane.xlu0 %520
        %v522 = vsel %vm327, %v461, -inf
        %523 = vmax.xlane.f32.xlu0 %v522
        %v524 = vpop.xlane.xlu0 %523
        %v525 = vsel %vm327, %v507, -inf
        %526 = vmax.xlane.f32.xlu0 %v525
        %v527 = vpop.xlane.xlu0 %526
        %v528 = vmax.f32 %v512, %v518
        %v529 = vmax.f32 %v513, %v521
        %v530 = vmax.f32 %v514, %v524
        %v531 = vmax.f32 %v515, %v527
        %v532 = vsub.f32 %v512, %v528
        %v533 = vsub.f32 %v513, %v529
        %v534 = vsub.f32 %v514, %v530
        %v535 = vsub.f32 %v515, %v531
        %v536 = vmul.f32 %v532, 1.442695
        %v537 = vpow.pop %v536
        %v538 = vmul.f32 %v533, 1.442695
        %v539 = vpow.pop %v538
        %v540 = vmul.f32 %v534, 1.442695
        %v541 = vpow.pop %v540
        %v542 = vmul.f32 %v535, 1.442695
        %v543 = vpow.pop %v542
        %545 = vset.pattern.permute.xlu0 0
        %546 = vperm.xlu0 %545, %v528
        %v547 = vpop.permute.xlu0 %546
        %550 = vset.pattern.permute.xlu0 0
        %551 = vperm.xlu0 %550, %v529
        %v552 = vpop.permute.xlu0 %551
        %555 = vset.pattern.permute.xlu0 0
        %556 = vperm.xlu0 %555, %v530
        %v557 = vpop.permute.xlu0 %556
        %560 = vset.pattern.permute.xlu0 0
        %561 = vperm.xlu0 %560, %v531
        %v562 = vpop.permute.xlu0 %561
        %v564 = vsub.f32 %v369, %v547
        %v565 = vsub.f32 %v415, %v552
        %v566 = vsub.f32 %v461, %v557
        %v567 = vsub.f32 %v507, %v562
        %v568 = vmul.f32 %v564, 1.442695
        %v569 = vpow.pop %v568
        %v570 = vmul.f32 %v565, 1.442695
        %v571 = vpow.pop %v570
        %v572 = vmul.f32 %v566, 1.442695
        %v573 = vpow.pop %v572
        %v574 = vmul.f32 %v567, 1.442695
        %v575 = vpow.pop %v574
        %v576 = vld [vmem:[#allocation3] sm:$0xff]
        %v577 = vld [vmem:[#allocation3 + $0x8] sm:$0xff]
        %v578 = vld [vmem:[#allocation3 + $0x10] sm:$0xff]
        %v579 = vld [vmem:[#allocation3 + $0x18] sm:$0xff]
        %v580 = vmul.f32 %v537, %v576
        %v581 = vmul.f32 %v539, %v577
        %v582 = vmul.f32 %v541, %v578
        %v583 = vmul.f32 %v543, %v579
        %v584 = vsel %vm327, %v569, 0.0
        %585 = vadd.xlane.f32.xlu0 %v584
        %v586 = vpop.xlane.xlu0 %585
        %v587 = vsel %vm327, %v571, 0.0
        %588 = vadd.xlane.f32.xlu0 %v587
        %v589 = vpop.xlane.xlu0 %588
        %v590 = vsel %vm327, %v573, 0.0
        %591 = vadd.xlane.f32.xlu0 %v590
        %v592 = vpop.xlane.xlu0 %591
        %v593 = vsel %vm327, %v575, 0.0
        %594 = vadd.xlane.f32.xlu0 %v593
        %v595 = vpop.xlane.xlu0 %594
        %v596 = vadd.f32 %v580, %v586
        %v597 = vadd.f32 %v581, %v589
        %v598 = vadd.f32 %v582, %v592
        %v599 = vadd.f32 %v583, %v595
        %vm600 = vcmask 7168
        %601 = vst.msk [vmem:[#allocation3] sm:$0xff] %vm600, %v596
        %602 = vst.msk [vmem:[#allocation3 + $0x8] sm:$0xff] %vm600, %v597
        %603 = vst.msk [vmem:[#allocation3 + $0x10] sm:$0xff] %vm600, %v598
        %604 = vst.msk [vmem:[#allocation3 + $0x18] sm:$0xff] %vm600, %v599
        %v605 = vld [vmem:[#allocation4] sm:$0xff]
        %v606 = vld [vmem:[#allocation4 + $0x8] sm:$0xff]
        %v607 = vld [vmem:[#allocation4 + $0x10] sm:$0xff]
        %v608 = vld [vmem:[#allocation4 + $0x18] sm:$0xff]
        %610 = vset.pattern.permute.xlu0 0
        %611 = vperm.xlu0 %610, %v537
        %v612 = vpop.permute.xlu0 %611
        %615 = vset.pattern.permute.xlu0 0
        %616 = vperm.xlu0 %615, %v539
        %v617 = vpop.permute.xlu0 %616
        %620 = vset.pattern.permute.xlu0 0
        %621 = vperm.xlu0 %620, %v541
        %v622 = vpop.permute.xlu0 %621
        %625 = vset.pattern.permute.xlu0 0
        %626 = vperm.xlu0 %625, %v543
        %v627 = vpop.permute.xlu0 %626
        %v629 = vmul.f32 %v612, %v605
        %v630 = vmul.f32 %v617, %v606
        %v631 = vmul.f32 %v622, %v607
        %v632 = vmul.f32 %v627, %v608
        %v633 = vpack.c.bf16 %v569, %v569
        %v634 = vpack.c.bf16 %v571, %v571
        %v635 = vpack.c.bf16 %v573, %v573
        %v636 = vpack.c.bf16 %v575, %v575
        %v638 = vsel %vm327, %v633, 0
        %vm640 = vcmask 1043456
        %v642 = vsel %vm640, %v323, 0
        %644 = vmatprep.subr.bf16.mxu0 0
        %645 = vmatpush1.bf16.msra.mxu0 %v642
        %646 = vmatprep.subr.bf16.mxu0 0
        %647 = vmatpush1.bf16.msra.mxu0 0
        %648 = vmatprep.subr.bf16.mxu0 0
        %649 = vmatpush1.bf16.msra.mxu0 0
        %650 = vmatprep.subr.bf16.mxu0 0
        %651 = vmatpush1.bf16.msra.mxu0 0
        %652 = vmatprep.subr.bf16.mxu0 0
        %653 = vmatpush1.bf16.msra.mxu0 0
        %654 = vmatprep.subr.bf16.mxu0 0
        %655 = vmatpush1.bf16.msra.mxu0 0
        %656 = vmatprep.subr.bf16.mxu0 0
        %657 = vmatpush1.bf16.msra.mxu0 0
        %658 = vmatprep.subr.bf16.mxu0 0
        %659 = vmatpush1.bf16.msra.mxu0 0
        %660 = vmatprep.subr.bf16.mxu0 0
        %661 = vmatpush1.bf16.msra.mxu0 0
        %662 = vmatprep.subr.bf16.mxu0 0
        %663 = vmatpush1.bf16.msra.mxu0 0
        %664 = vmatprep.subr.bf16.mxu0 0
        %665 = vmatpush1.bf16.msra.mxu0 0
        %666 = vmatprep.subr.bf16.mxu0 0
        %667 = vmatpush1.bf16.msra.mxu0 0
        %668 = vmatprep.subr.bf16.mxu0 0
        %669 = vmatpush1.bf16.msra.mxu0 0
        %670 = vmatprep.subr.bf16.mxu0 0
        %671 = vmatpush1.bf16.msra.mxu0 0
        %672 = vmatprep.subr.bf16.mxu0 0
        %673 = vmatpush1.bf16.msra.mxu0 0
        %674 = vmatprep.subr.bf16.mxu0 0
        %675 = vmatpush1.bf16.msra.mxu0 0
        %676 = vmatprep.mubr.bf16.mxu0 0
        %677 = vmatmul.mubr.bf16.gmra.mrb[0].mxu0 %v638
        %v678 = vpop.f32.mrb[0].mxu0
        %v679 = vadd.f32 0.0, %v678
        %v680 = vpop.f32.mrb[0].mxu0
        %v681 = vpop.f32.mrb[0].mxu0
        %v682 = vpop.f32.mrb[0].mxu0
        %683 = vdwg.mxu0
        %v685 = vsel %vm327, %v634, 0
        %v688 = vsel %vm640, %v324, 0
        %690 = vmatprep.subr.bf16.mxu0 0
        %691 = vmatpush1.bf16.msra.mxu0 %v688
        %692 = vmatprep.subr.bf16.mxu0 0
        %693 = vmatpush1.bf16.msra.mxu0 0
        %694 = vmatprep.subr.bf16.mxu0 0
        %695 = vmatpush1.bf16.msra.mxu0 0
        %696 = vmatprep.subr.bf16.mxu0 0
        %697 = vmatpush1.bf16.msra.mxu0 0
        %698 = vmatprep.subr.bf16.mxu0 0
        %699 = vmatpush1.bf16.msra.mxu0 0
        %700 = vmatprep.subr.bf16.mxu0 0
        %701 = vmatpush1.bf16.msra.mxu0 0
        %702 = vmatprep.subr.bf16.mxu0 0
        %703 = vmatpush1.bf16.msra.mxu0 0
        %704 = vmatprep.subr.bf16.mxu0 0
        %705 = vmatpush1.bf16.msra.mxu0 0
        %706 = vmatprep.subr.bf16.mxu0 0
        %707 = vmatpush1.bf16.msra.mxu0 0
        %708 = vmatprep.subr.bf16.mxu0 0
        %709 = vmatpush1.bf16.msra.mxu0 0
        %710 = vmatprep.subr.bf16.mxu0 0
        %711 = vmatpush1.bf16.msra.mxu0 0
        %712 = vmatprep.subr.bf16.mxu0 0
        %713 = vmatpush1.bf16.msra.mxu0 0
        %714 = vmatprep.subr.bf16.mxu0 0
        %715 = vmatpush1.bf16.msra.mxu0 0
        %716 = vmatprep.subr.bf16.mxu0 0
        %717 = vmatpush1.bf16.msra.mxu0 0
        %718 = vmatprep.subr.bf16.mxu0 0
        %719 = vmatpush1.bf16.msra.mxu0 0
        %720 = vmatprep.subr.bf16.mxu0 0
        %721 = vmatpush1.bf16.msra.mxu0 0
        %722 = vmatprep.mubr.bf16.mxu0 0
        %723 = vmatmul.mubr.bf16.gmra.mrb[0].mxu0 %v685
        %v724 = vpop.f32.mrb[0].mxu0
        %v725 = vadd.f32 0.0, %v724
        %v726 = vpop.f32.mrb[0].mxu0
        %v727 = vpop.f32.mrb[0].mxu0
        %v728 = vpop.f32.mrb[0].mxu0
        %729 = vdwg.mxu0
        %v731 = vsel %vm327, %v635, 0
        %v734 = vsel %vm640, %v325, 0
        %736 = vmatprep.subr.bf16.mxu0 0
        %737 = vmatpush1.bf16.msra.mxu0 %v734
        %738 = vmatprep.subr.bf16.mxu0 0
        %739 = vmatpush1.bf16.msra.mxu0 0
        %740 = vmatprep.subr.bf16.mxu0 0
        %741 = vmatpush1.bf16.msra.mxu0 0
        %742 = vmatprep.subr.bf16.mxu0 0
        %743 = vmatpush1.bf16.msra.mxu0 0
        %744 = vmatprep.subr.bf16.mxu0 0
        %745 = vmatpush1.bf16.msra.mxu0 0
        %746 = vmatprep.subr.bf16.mxu0 0
        %747 = vmatpush1.bf16.msra.mxu0 0
        %748 = vmatprep.subr.bf16.mxu0 0
        %749 = vmatpush1.bf16.msra.mxu0 0
        %750 = vmatprep.subr.bf16.mxu0 0
        %751 = vmatpush1.bf16.msra.mxu0 0
        %752 = vmatprep.subr.bf16.mxu0 0
        %753 = vmatpush1.bf16.msra.mxu0 0
        %754 = vmatprep.subr.bf16.mxu0 0
        %755 = vmatpush1.bf16.msra.mxu0 0
        %756 = vmatprep.subr.bf16.mxu0 0
        %757 = vmatpush1.bf16.msra.mxu0 0
        %758 = vmatprep.subr.bf16.mxu0 0
        %759 = vmatpush1.bf16.msra.mxu0 0
        %760 = vmatprep.subr.bf16.mxu0 0
        %761 = vmatpush1.bf16.msra.mxu0 0
        %762 = vmatprep.subr.bf16.mxu0 0
        %763 = vmatpush1.bf16.msra.mxu0 0
        %764 = vmatprep.subr.bf16.mxu0 0
        %765 = vmatpush1.bf16.msra.mxu0 0
        %766 = vmatprep.subr.bf16.mxu0 0
        %767 = vmatpush1.bf16.msra.mxu0 0
        %768 = vmatprep.mubr.bf16.mxu0 0
        %769 = vmatmul.mubr.bf16.gmra.mrb[0].mxu0 %v731
        %v770 = vpop.f32.mrb[0].mxu0
        %v771 = vadd.f32 0.0, %v770
        %v772 = vpop.f32.mrb[0].mxu0
        %v773 = vpop.f32.mrb[0].mxu0
        %v774 = vpop.f32.mrb[0].mxu0
        %775 = vdwg.mxu0
        %v777 = vsel %vm327, %v636, 0
        %v780 = vsel %vm640, %v326, 0
        %782 = vmatprep.subr.bf16.mxu0 0
        %783 = vmatpush1.bf16.msra.mxu0 %v780
        %784 = vmatprep.subr.bf16.mxu0 0
        %785 = vmatpush1.bf16.msra.mxu0 0
        %786 = vmatprep.subr.bf16.mxu0 0
        %787 = vmatpush1.bf16.msra.mxu0 0
        %788 = vmatprep.subr.bf16.mxu0 0
        %789 = vmatpush1.bf16.msra.mxu0 0
        %790 = vmatprep.subr.bf16.mxu0 0
        %791 = vmatpush1.bf16.msra.mxu0 0
        %792 = vmatprep.subr.bf16.mxu0 0
        %793 = vmatpush1.bf16.msra.mxu0 0
        %794 = vmatprep.subr.bf16.mxu0 0
        %795 = vmatpush1.bf16.msra.mxu0 0
        %796 = vmatprep.subr.bf16.mxu0 0
        %797 = vmatpush1.bf16.msra.mxu0 0
        %798 = vmatprep.subr.bf16.mxu0 0
        %799 = vmatpush1.bf16.msra.mxu0 0
        %800 = vmatprep.subr.bf16.mxu0 0
        %801 = vmatpush1.bf16.msra.mxu0 0
        %802 = vmatprep.subr.bf16.mxu0 0
        %803 = vmatpush1.bf16.msra.mxu0 0
        %804 = vmatprep.subr.bf16.mxu0 0
        %805 = vmatpush1.bf16.msra.mxu0 0
        %806 = vmatprep.subr.bf16.mxu0 0
        %807 = vmatpush1.bf16.msra.mxu0 0
        %808 = vmatprep.subr.bf16.mxu0 0
        %809 = vmatpush1.bf16.msra.mxu0 0
        %810 = vmatprep.subr.bf16.mxu0 0
        %811 = vmatpush1.bf16.msra.mxu0 0
        %812 = vmatprep.subr.bf16.mxu0 0
        %813 = vmatpush1.bf16.msra.mxu0 0
        %814 = vmatprep.mubr.bf16.mxu0 0
        %815 = vmatmul.mubr.bf16.gmra.mrb[0].mxu0 %v777
        %v816 = vpop.f32.mrb[0].mxu0
        %v817 = vadd.f32 0.0, %v816
        %v818 = vpop.f32.mrb[0].mxu0
        %v819 = vpop.f32.mrb[0].mxu0
        %v820 = vpop.f32.mrb[0].mxu0
        %821 = vdwg.mxu0
        %v822 = vadd.f32 %v629, %v679
        %v823 = vadd.f32 %v630, %v725
        %v824 = vadd.f32 %v631, %v771
        %v825 = vadd.f32 %v632, %v817
        %826 = vst.msk [vmem:[#allocation4] sm:$0xff] %vm327, %v822
        %827 = vst.msk [vmem:[#allocation4 + $0x8] sm:$0xff] %vm327, %v823
        %828 = vst.msk [vmem:[#allocation4 + $0x10] sm:$0xff] %vm327, %v824
        %829 = vst.msk [vmem:[#allocation4 + $0x18] sm:$0xff] %vm327, %v825
        %830 = vst.msk [vmem:[#allocation2] sm:$0xff] %vm600, %v528
        %831 = vst.msk [vmem:[#allocation2 + $0x8] sm:$0xff] %vm600, %v529
        %832 = vst.msk [vmem:[#allocation2 + $0x10] sm:$0xff] %vm600, %v530
        %833 = vst.msk [vmem:[#allocation2 + $0x18] sm:$0xff] %vm600, %v531
        %p834 = scmp.eq.s32.totalorder %s30, 1
        // Predicated region
        $region49: #{tpu_custom_call.1} parent=31 // pred_check
          %p835 = pneg %p834
        $region50: #{tpu_custom_call.1} parent=31 // pred_check_branch
          %837 = sbr.rel (%p835) target = $region52
        $region51: #{tpu_custom_call.1} parent=31 // pred_region
          %v838 = vld [vmem:[#allocation3] sm:$0xff]
          %v839 = vld [vmem:[#allocation3 + $0x8] sm:$0xff]
          %v840 = vld [vmem:[#allocation3 + $0x10] sm:$0xff]
          %v841 = vld [vmem:[#allocation3 + $0x18] sm:$0xff]
          %v842 = vrcp.pop %v838
          %v843 = vrcp.pop %v839
          %v844 = vrcp.pop %v840
          %v845 = vrcp.pop %v841
          %v846 = vld [vmem:[#allocation4] sm:$0xff]
          %v847 = vld [vmem:[#allocation4 + $0x8] sm:$0xff]
          %v848 = vld [vmem:[#allocation4 + $0x10] sm:$0xff]
          %v849 = vld [vmem:[#allocation4 + $0x18] sm:$0xff]
          %851 = vset.pattern.permute.xlu0 0
          %852 = vperm.xlu0 %851, %v842
          %v853 = vpop.permute.xlu0 %852
          %856 = vset.pattern.permute.xlu0 0
          %857 = vperm.xlu0 %856, %v843
          %v858 = vpop.permute.xlu0 %857
          %861 = vset.pattern.permute.xlu0 0
          %862 = vperm.xlu0 %861, %v844
          %v863 = vpop.permute.xlu0 %862
          %866 = vset.pattern.permute.xlu0 0
          %867 = vperm.xlu0 %866, %v845
          %v868 = vpop.permute.xlu0 %867
          %v870 = vmul.f32 %v846, %v853
          %v871 = vmul.f32 %v847, %v858
          %v872 = vmul.f32 %v848, %v863
          %v873 = vmul.f32 %v849, %v868
          %v874 = vpack.c.bf16 %v870, %v870
          %v875 = vpack.c.bf16 %v871, %v871
          %v876 = vpack.c.bf16 %v872, %v872
          %v877 = vpack.c.bf16 %v873, %v873
          %vm878 = vcmask 60416
          %879 = vst.msk [vmem:[%s295] sm:$0xf] %vm878, %v874
          %880 = vst.msk [vmem:[%s295 + $0x4] sm:$0xf] %vm878, %v875
          %881 = vst.msk [vmem:[%s295 + $0x8] sm:$0xf] %vm878, %v876
          %882 = vst.msk [vmem:[%s295 + $0xc] sm:$0xf] %vm878, %v877
        $region52: #{tpu_custom_call.1} parent=31 // pred_fallthru
          _
        %s883 = sand.u32 %s136, 1
        %s884 = scalar_lea.sflag [#allocation7], %s883
        %s885 = sand.u32 %s136, 1
        %s886 = smul.addr %s885, 16
        %s887 = scalar_lea.vmem [#allocation11], %s886
        // Predicated region
        $region53: #{tpu_custom_call.1} parent=31 // pred_check
          %p888 = pneg %p146
        $region54: #{tpu_custom_call.1} parent=31 // pred_check_branch
          %890 = sbr.rel (%p888) target = $region56
        $region55: #{tpu_custom_call.1} parent=31 // pred_region
          %s892 = ssub.s32 256, 256
          %893 = vsyncadd %s884, %s892
          %s894 = smul.addr %s28, 8
          %s895 = sadd.s32 %s29, %s894
          %s896 = smul.addr %s895, 64
          %s897 = scalar_lea.hbm %s3, %s896
          %s898 = sshll.u32 %s887, 4
          %s899 = int_to_ptr.vmem [resolvable:$true] %s898
          %904 = dma.vmem_to_hbm [thread:$0]  %s899, 256, %s897, %s884, 64, 128, 4
        $region56: #{tpu_custom_call.1} parent=31 // pred_fallthru
          _
      $region32: #{tpu_custom_call.1} parent=5 // pred_fallthru
        _
      %p905 = scmp.le.s32.totalorder 2, %s18
      // Predicated region
      $region57: #{tpu_custom_call.1} parent=5 // pred_check
        %p906 = pneg %p905
      $region58: #{tpu_custom_call.1} parent=5 // pred_check_branch
        %908 = sbr.rel (%p906) target = $region60
      $region59: #{tpu_custom_call.1} parent=5 // pred_region
        %s909 = ssub.s32 %s18, 2
        // Predicated region
        $region61: #{tpu_custom_call.1} parent=59 // pred_check
          %p910 = pneg %p152
        $region62: #{tpu_custom_call.1} parent=59 // pred_check_branch
          %912 = sbr.rel (%p910) target = $region64
        $region63: #{tpu_custom_call.1} parent=59 // pred_region
          %s913 = sand.u32 %s137, 1
          %s914 = scalar_lea.sflag [#allocation7], %s913
          %s915 = sand.u32 %s137, 1
          %s916 = smul.addr %s915, 16
          %s917 = scalar_lea.vmem [#allocation11], %s916
          %918 = dma.done %s914, 256
        $region64: #{tpu_custom_call.1} parent=59 // pred_fallthru
          _
      $region60: #{tpu_custom_call.1} parent=5 // pred_fallthru
        _
    $region6: #{tpu_custom_call.1} parent=1 // loop_footer
      %s22 = sadd.s32 1, %s18
    $region7: #{tpu_custom_call.1} parent=1 // loop_footer_branch
      %17 = sbr.rel target = $region3
    $region8: #{tpu_custom_call.1} parent=1 // loop_exit
      _
    %919 = vsyncpa [#allocation6], 1
    %s920 = scalar_lea.sflag [#allocation6], 1
    %921 = vsyncpa %s920, 1
    %922 = vsyncpa [#allocation9], 1
    %s923 = scalar_lea.sflag [#allocation9], 1
    %924 = vsyncpa %s923, 1
    %925 = vsyncpa [#allocation7], 1
    %s926 = scalar_lea.sflag [#allocation7], 1
    %927 = vsyncpa %s926, 1

</llo_original>
